<compile_context>
chip_gen: v7x
topology: tpu7x:2x2x1
jax: 0.10.0
libtpu: 0.0.40
codegen_flags: <defaults>
</compile_context>

<pallas_src>
import functools

import jax
import jax.numpy as jnp
from jax.experimental import pallas as pl
from jax.experimental.pallas import tpu as pltpu


def _linear_kernel(x_ref, w_ref, b_ref, o_ref, *, n_feature, tk, nk):
    """One (tm, tk) tile of y = x @ w_col + b.

    x_ref: (tm, tk) VMEM      w_ref: (tk, 1) VMEM (reused across the batch axis)
    b_ref: (1,)     SMEM      o_ref: (tm, 1) VMEM (resident across the K axis)
    """
    x = x_ref[...]

    if nk == 1:
        # Whole feature dim in one block: single MXU matvec + bias.
        o_ref[...] = (
            jnp.dot(x, w_ref[...], preferred_element_type=jnp.float32) + b_ref[0]
        )
        return

    k = pl.program_id(1)

    if n_feature % tk != 0:
        # Ragged last K block: the DMA only fills the valid columns; zero the stale
        # tail so (masked x) * (zero-padded w) contributes exactly 0 to the sum.
        col = jax.lax.broadcasted_iota(jnp.int32, x.shape, 1) + k * tk
        x = jnp.where(col < n_feature, x, 0.0)

    @pl.when(k == 0)
    def _():
        o_ref[...] = jnp.zeros_like(o_ref)

    o_ref[...] += jnp.dot(x, w_ref[...], preferred_element_type=jnp.float32)

    @pl.when(k == nk - 1)
    def _():
        o_ref[...] += b_ref[0]


def _vmem_budgets():
    """Return (per-x-buffer budget bytes, scoped vmem_limit_bytes), generation aware."""
    vmem = 0
    try:
        vmem = int(getattr(pltpu.get_tpu_info(), "vmem_capacity_bytes", 0) or 0)
    except Exception:
        vmem = 0
    if vmem >= 128 * 1024 * 1024:            # v5e / v6e: 128 MiB VMEM
        return 24 * 1024 * 1024, 100 * 1024 * 1024
    # v7x (64 MiB per TensorCore) or unknown: stay conservative.
    return 12 * 1024 * 1024, 48 * 1024 * 1024


def _floor8(n):
    return max(8, (n // 8) * 8)


def _choose_tiles(batch, n_feature, x_buf_budget):
    """Pick (tm, tk) so one double-buffered x tile stays within the VMEM budget."""
    row_bytes = 4 * n_feature
    if 8 * row_bytes <= x_buf_budget:
        # No K tiling needed: stream full-width row tiles, as big as the budget allows.
        tk = n_feature
        if batch <= 8:
            tm = batch                                   # one full-extent block
        else:
            tm = _floor8(min(x_buf_budget // row_bytes, batch))
            # Large batches: keep >= 2 grid steps so the "parallel" axis can feed both
            # TensorCores on v7x (harmless on single-TC v5e/v6e).
            if batch >= 2048 and tm >= batch:
                tm = min(_floor8(batch), ((batch + 1) // 2 + 7) // 8 * 8)
    else:
        # Very large n_feature: add a feature (reduction) grid axis.
        tm = batch if batch <= 8 else min(512, _floor8(batch))
        tk = max(128, (x_buf_budget // (4 * tm)) // 128 * 128)
    return tm, tk


def linear_net_forward(x, weight, bias):
    """Forward pass of LinearNet (nn.Linear(n_feature, 1)): y = x @ W.T + b.

    x:      (B, n_feature) float32
    weight: (1, n_feature) float32   (native PyTorch nn.Linear layout, NOT transposed)
    bias:   (1,)           float32
    returns (B, 1) float32
    """
    B, n_feature = x.shape
    x = x.astype(jnp.float32)
    # (1, K) -> (K, 1): same contiguous data (layout plumbing, not an HBM pass); lets the
    # kernel feed the MXU directly with x_tile @ w_col.
    w_col = jnp.reshape(weight.astype(jnp.float32), (n_feature, 1))
    b = bias.astype(jnp.float32)

    x_buf_budget, vmem_limit = _vmem_budgets()
    tm, tk = _choose_tiles(B, n_feature, x_buf_budget)
    nm = pl.cdiv(B, tm)
    nk = pl.cdiv(n_feature, tk)

    if nk > 1 and n_feature % tk != 0:
        # Tiny one-off pad of the weight column so the ragged K tail multiplies against
        # exact zeros (the stale x tail is masked in-kernel).
        w_col = jnp.pad(w_col, ((0, nk * tk - n_feature), (0, 0)))

    kernel = functools.partial(_linear_kernel, n_feature=n_feature, tk=tk, nk=nk)

    return pl.pallas_call(
        kernel,
        out_shape=jax.ShapeDtypeStruct((B, 1), jnp.float32),
        grid=(nm, nk),
        in_specs=[
            # x: streamed, double-buffered (tm, tk) tiles.
            # (If profiling ever shows exposed DMA, pipeline_mode=pl.Buffered(3) here is
            #  the next cheap experiment; account for it in the v7x VMEM budget.)
            pl.BlockSpec((tm, tk), lambda i, k: (i, k)),
            # weight column: grid-invariant along the batch axis.
            pl.BlockSpec((tk, 1), lambda i, k: (k, 0)),
            # bias: SMEM scalar, no per-step VMEM DMA.
            pl.BlockSpec(memory_space=pltpu.MemorySpace.SMEM),
        ],
        out_specs=pl.BlockSpec((tm, 1), lambda i, k: (i, 0)),
        compiler_params=pltpu.CompilerParams(
            dimension_semantics=("parallel", "arbitrary"),
            vmem_limit_bytes=vmem_limit,
        ),
        cost_estimate=pl.CostEstimate(
            flops=2 * B * n_feature,
            transcendentals=0,
            bytes_accessed=4 * (B * n_feature + n_feature + B + 1),
        ),
    )(x, w_col, b)


if __name__ == "__main__":
    key = jax.random.PRNGKey(0)
    kx, kw, kb, kx2 = jax.random.split(key, 4)

    n_feature = 32
    bound = 1.0 / (n_feature ** 0.5)
    # Deterministic parameter init mirroring nn.Linear's default uniform(-1/sqrt(K), 1/sqrt(K)).
    weight = jax.random.uniform(kw, (1, n_feature), jnp.float32, -bound, bound)
    bias = jax.random.uniform(kb, (1,), jnp.float32, -bound, bound)

    # Small batch, exact tile.
    x1 = jax.random.normal(kx, (8, n_feature), jnp.float32)
    y1 = linear_net_forward(x1, weight, bias)
    jax.block_until_ready(y1)
    assert y1.shape == (8, 1)
    assert jnp.allclose(y1, x1 @ weight.T + bias, atol=1e-5, rtol=1e-5)

    # Ragged batch: exercises the pad-free boundary-block path.
    x2 = jax.random.normal(kx2, (10, n_feature), jnp.float32)
    y2 = linear_net_forward(x2, weight, bias)
    jax.block_until_ready(y2)
    assert y2.shape == (10, 1)
    assert jnp.allclose(y2, x2 @ weight.T + bias, atol=1e-5, rtol=1e-5)

    print("KERNEL_OK")
</pallas_src>

<mosaic_0001>
module attributes {stable_mosaic.version = 11 : i64} {
  func.func @_linear_kernel(%arg0: i32, %arg1: i32, %arg2: memref<8x32xf32, #tpu.memory_space<vmem>>, %arg3: memref<32x1xf32, #tpu.memory_space<vmem>>, %arg4: memref<1xf32, #tpu.memory_space<smem>>, %arg5: memref<8x1xf32, #tpu.memory_space<vmem>>) attributes {dimension_semantics = [#tpu.dimension_semantics<parallel>, #tpu.dimension_semantics<arbitrary>], iteration_bounds = array<i64: 1, 1>, scalar_prefetch = 0 : i64, scratch_operands = 0 : i64, tpu.core_type = #tpu.core_type<tc>, window_params = [{transform_indices = @transform_0, window_bounds = array<i64: 8, 32>}, {transform_indices = @transform_1, window_bounds = array<i64: 32, 1>}, {transform_indices = @transform_2, window_bounds = array<i64: 1>}, {transform_indices = @transform_3, window_bounds = array<i64: 8, 1>}]} {
    %c0 = arith.constant 0 : index
    %c0_0 = arith.constant 0 : index
    %0 = vector.load %arg2[%c0, %c0_0] : memref<8x32xf32, #tpu.memory_space<vmem>>, vector<8x32xf32>
    %c0_1 = arith.constant 0 : index
    %c0_2 = arith.constant 0 : index
    %1 = vector.load %arg3[%c0_1, %c0_2] : memref<32x1xf32, #tpu.memory_space<vmem>>, vector<32x1xf32>
    %cst = arith.constant dense<0.000000e+00> : vector<8x1xf32>
    %2 = tpu.matmul %0, %1, %cst {dimension_numbers = #tpu.dot_dimension_numbers<[1], [0], [0], [1], [0, 0, 1, 1], [], []>} : vector<8x32xf32>, vector<32x1xf32>, vector<8x1xf32> -> vector<8x1xf32>
    %c0_3 = arith.constant 0 : index
    %3 = memref.load %arg4[%c0_3] : memref<1xf32, #tpu.memory_space<smem>>
    %4 = vector.broadcast %3 : f32 to vector<8x1xf32>
    %5 = arith.addf %2, %4 : vector<8x1xf32>
    %c0_4 = arith.constant 0 : index
    %c0_5 = arith.constant 0 : index
    %6 = vector.load %arg5[%c0_4, %c0_5] : memref<8x1xf32, #tpu.memory_space<vmem>>, vector<8x1xf32>
    tpu.vector_store %arg5[%c0_4, %c0_5], %5 {strides = array<i32>} : memref<8x1xf32, #tpu.memory_space<vmem>>, vector<8x1xf32>,
    return
  }
  func.func @transform_0(%arg0: i32, %arg1: i32) -> (i32, i32) {
    %c0_i32 = arith.constant 0 : i32
    return %arg0, %arg1 : i32, i32
  }
  func.func @transform_1(%arg0: i32, %arg1: i32) -> (i32, i32) {
    %c0_i32 = arith.constant 0 : i32
    %c0_i32_0 = arith.constant 0 : i32
    return %arg1, %c0_i32 : i32, i32
  }
  func.func @transform_2(%arg0: i32, %arg1: i32) -> i32 {
    %c0_i32 = arith.constant 0 : i32
    %c0_i32_0 = arith.constant 0 : i32
    return %c0_i32 : i32
  }
  func.func @transform_3(%arg0: i32, %arg1: i32) -> (i32, i32) {
    %c0_i32 = arith.constant 0 : i32
    %c0_i32_0 = arith.constant 0 : i32
    return %arg0, %c0_i32 : i32, i32
  }
}

</mosaic_0001>

<llo_original>
// kernel: tpu_custom_call.1
$region0: #{tpu_custom_call.1}
  #allocation0 [shape = 'u32[]', space=smem, size = 0x4, offset = 0x4, fixed_abs, tag = 'smem constant byte address 0x4 - core index']
  #allocation1 [shape = 'u32[144,128]{1,0:T(1,128)}', space=vmem, size = 0x12000, scoped, tag = 'internal scratch']
  #allocation2 [shape = 'f32[1]{0:T(128)S(6)}', space=smem, size = 0x200, scoped, tag = 'scoped memory for tpu_custom_call.1']
  %s0 = inlined_call_operand.vmem [shape: f32[8,32], index: 0, kind: input, shape index: {}]
  %s1 = inlined_call_operand.vmem [shape: f32[32,1], index: 1, kind: input, shape index: {}]
  %s2 = inlined_call_operand.<no memory space> [shape: f32[1], index: 2, kind: input, shape index: {}]
  %s3 = inlined_call_operand.vmem [shape: f32[8,1], index: 3, kind: output, shape index: {}]
  %s4 = sld [smem:[#allocation0]]
  $region22: #{tpu_custom_call.1} parent=0
    _
  %s6 = ssub.s32 1, %s4
  %s7 = scalar_select 0, %s6, %s4
  %8 = sst [smem:[#allocation2]] %s2
  // Predicated region
  $region2: #{tpu_custom_call.1} parent=0 // pred_check
    _
  $region3: #{tpu_custom_call.1} parent=0 // pred_check_branch
    %10 = sbr.rel (0) target = $region5
  $region4: #{tpu_custom_call.1} parent=0 // pred_region
    _
  $region5: #{tpu_custom_call.1} parent=0 // pred_fallthru
    _
  // Predicated region
  $region6: #{tpu_custom_call.1} parent=0 // pred_check
    _
  $region7: #{tpu_custom_call.1} parent=0 // pred_check_branch
    %12 = sbr.rel (0) target = $region9
  $region8: #{tpu_custom_call.1} parent=0 // pred_region
    _
  $region9: #{tpu_custom_call.1} parent=0 // pred_fallthru
    _
  // Predicated region
  $region10: #{tpu_custom_call.1} parent=0 // pred_check
    _
  $region11: #{tpu_custom_call.1} parent=0 // pred_check_branch
    %14 = sbr.rel (0) target = $region13
  $region12: #{tpu_custom_call.1} parent=0 // pred_region
    _
  $region13: #{tpu_custom_call.1} parent=0 // pred_fallthru
    _
  %v15 = vld [vmem:[%s0] sm:$0xff]
  %v16 = vld [vmem:[%s1] sm:$0xff]
  %v17 = vld [vmem:[%s1 + $0x8] sm:$0xff]
  %v18 = vld [vmem:[%s1 + $0x10] sm:$0xff]
  %v19 = vld [vmem:[%s1 + $0x18] sm:$0xff]
  %s20 = sld [smem:[#allocation2]]
  %v21 = vstv %s20
  %vm22 = vcmask 261120
  %v24 = vsel %vm22, %v15, 0
  %26 = vmatprep.subr.mxu0 0.0
  %27 = vmatpush1.msra.mxu0 %v16
  %28 = vmatprep.subr.mxu0 0.0
  %29 = vmatpush1.msra.mxu0 %v17
  %30 = vmatprep.subr.mxu0 0.0
  %31 = vmatpush1.msra.mxu0 %v18
  %32 = vmatprep.subr.mxu0 0.0
  %33 = vmatpush1.msra.mxu0 %v19
  %34 = vmatprep.subr.mxu0 0.0
  %35 = vmatpush1.msra.mxu0 0.0
  %36 = vmatprep.subr.mxu0 0.0
  %37 = vmatpush1.msra.mxu0 0.0
  %38 = vmatprep.subr.mxu0 0.0
  %39 = vmatpush1.msra.mxu0 0.0
  %40 = vmatprep.subr.mxu0 0.0
  %41 = vmatpush1.msra.mxu0 0.0
  %42 = vmatprep.subr.mxu0 0.0
  %43 = vmatpush1.msra.mxu0 0.0
  %44 = vmatprep.subr.mxu0 0.0
  %45 = vmatpush1.msra.mxu0 0.0
  %46 = vmatprep.subr.mxu0 0.0
  %47 = vmatpush1.msra.mxu0 0.0
  %48 = vmatprep.subr.mxu0 0.0
  %49 = vmatpush1.msra.mxu0 0.0
  %50 = vmatprep.subr.mxu0 0.0
  %51 = vmatpush1.msra.mxu0 0.0
  %52 = vmatprep.subr.mxu0 0.0
  %53 = vmatpush1.msra.mxu0 0.0
  %54 = vmatprep.subr.mxu0 0.0
  %55 = vmatpush1.msra.mxu0 0.0
  %56 = vmatprep.subr.mxu0 0.0
  %57 = vmatpush1.msra.mxu0 0.0
  %58 = vmatprep.subr.mxu0 0.0
  %59 = vmatpush1.msra.mxu0 0.0
  %60 = vmatprep.subr.mxu0 0.0
  %61 = vmatpush1.msra.mxu0 0.0
  %62 = vmatprep.subr.mxu0 0.0
  %63 = vmatpush1.msra.mxu0 0.0
  %64 = vmatprep.subr.mxu0 0.0
  %65 = vmatpush1.msra.mxu0 0.0
  %66 = vmatprep.subr.mxu0 0.0
  %67 = vmatpush1.msra.mxu0 0.0
  %68 = vmatprep.subr.mxu0 0.0
  %69 = vmatpush1.msra.mxu0 0.0
  %70 = vmatprep.subr.mxu0 0.0
  %71 = vmatpush1.msra.mxu0 0.0
  %72 = vmatprep.subr.mxu0 0.0
  %73 = vmatpush1.msra.mxu0 0.0
  %74 = vmatprep.subr.mxu0 0.0
  %75 = vmatpush1.msra.mxu0 0.0
  %76 = vmatprep.subr.mxu0 0.0
  %77 = vmatpush1.msra.mxu0 0.0
  %78 = vmatprep.subr.mxu0 0.0
  %79 = vmatpush1.msra.mxu0 0.0
  %80 = vmatprep.subr.mxu0 0.0
  %81 = vmatpush1.msra.mxu0 0.0
  %82 = vmatprep.subr.mxu0 0.0
  %83 = vmatpush1.msra.mxu0 0.0
  %84 = vmatprep.subr.mxu0 0.0
  %85 = vmatpush1.msra.mxu0 0.0
  %86 = vmatprep.subr.mxu0 0.0
  %87 = vmatpush1.msra.mxu0 0.0
  %88 = vmatprep.subr.mxu0 0.0
  %89 = vmatpush1.msra.mxu0 0.0
  %90 = vmatprep.mubr.f32.mxu0 0.0
  %91 = vmatmul.mubr.f32.gmra.mrb[0].mxu0 %v24
  %v92 = vpop.f32.mrb[0].mxu0
  %v93 = vadd.f32 %v21, %v92
  %v94 = vpop.f32.mrb[0].mxu0
  %95 = vdwg.mxu0
  %vm96 = vcmask 7168
  %97 = vst.msk [vmem:[%s3] sm:$0xff] %vm96, %v93
  // Predicated region
  $region14: #{tpu_custom_call.1} parent=0 // pred_check
    _
  $region15: #{tpu_custom_call.1} parent=0 // pred_check_branch
    %99 = sbr.rel (0) target = $region17
  $region16: #{tpu_custom_call.1} parent=0 // pred_region
    _
  $region17: #{tpu_custom_call.1} parent=0 // pred_fallthru
    _
  // Predicated region
  $region18: #{tpu_custom_call.1} parent=0 // pred_check
    _
  $region19: #{tpu_custom_call.1} parent=0 // pred_check_branch
    %101 = sbr.rel (0) target = $region21
  $region20: #{tpu_custom_call.1} parent=0 // pred_region
    _
  $region21: #{tpu_custom_call.1} parent=0 // pred_fallthru
    _

</llo_original>
